<compile_context>
chip_gen: v7x
topology: tpu7x:2x2x1
jax: 0.10.0
libtpu: 0.0.40
codegen_flags: <defaults>
</compile_context>

<pallas_src>
import jax
import jax.numpy as jnp
from jax.experimental import pallas as pl
from jax.experimental.pallas import tpu as pltpu


def _column_linear_kernel(x_ref, w_ref, b_ref, o_ref):
    k = pl.program_id(1)

    @pl.when(k == 0)
    def _():
        # Initialize the resident output block with the bias (added exactly once).
        o_ref[...] = jnp.broadcast_to(b_ref[...], o_ref.shape)

    # bf16 x bf16 -> f32 accumulate on the MXU, straight into the f32 output
    # block (same block index across k, so it stays resident in VMEM).
    o_ref[...] += jnp.dot(
        x_ref[...], w_ref[...], preferred_element_type=jnp.float32
    )


def _pick_tiles(M, K, N):
    # Reduction tile: keep the whole K dimension resident when it is modest
    # (single k-step -> no per-k overhead); otherwise stream 512-wide chunks.
    if K <= 2048:
        tk = K
    else:
        tk = 512
        while K % tk != 0 and tk > 128:
            tk //= 2
    # Lane-dense, wide output tiles (multiple of 128).  Keep >= 2 parallel
    # j-steps when possible so both v7x TensorCores get work.
    tn = min(N, 1024)
    while N % tn != 0 and tn > 128:
        tn //= 2
    if N // tn < 2 and N >= 256 and (N // 2) % 128 == 0:
        tn = N // 2
    return tn, tk


@jax.jit
def column_linear(x, w_full, bias_full):
    """y = x @ w_full + bias_full   (f32 in / f32 out, bf16 matmul, f32 accum).

    x:         [M, K]  float32
    w_full:    [K, N]  float32  (concatenation of all rank shards, transposed)
    bias_full: [1, N]  float32  (rank-0 bias on the first shard, zeros elsewhere)
    returns:   [M, N]  float32
    """
    M, K = x.shape
    K2, N = w_full.shape
    assert K == K2

    tn, tk = _pick_tiles(M, K, N)
    assert N % tn == 0 and K % tk == 0

    # Halve the HBM stream of the dominant operand; MXU runs native bf16.
    x_bf16 = x.astype(jnp.bfloat16)
    w_bf16 = w_full.astype(jnp.bfloat16)

    grid = (N // tn, K // tk)

    return pl.pallas_call(
        _column_linear_kernel,
        out_shape=jax.ShapeDtypeStruct((M, N), jnp.float32),
        grid_spec=pltpu.PrefetchScalarGridSpec(
            num_scalar_prefetch=0,
            grid=grid,
            in_specs=[
                # x: full batch resident, only re-sliced along K.
                pl.BlockSpec((M, tk), lambda j, k: (0, k)),
                # W: streamed from HBM exactly once (k, j tiles).
                pl.BlockSpec((tk, tn), lambda j, k: (k, j)),
                # bias: one lane-dense row per output column tile.
                pl.BlockSpec((1, tn), lambda j, k: (0, j)),
            ],
            # Output block constant across k -> accumulator lives in o_ref.
            out_specs=pl.BlockSpec((M, tn), lambda j, k: (0, j)),
        ),
        compiler_params=pltpu.CompilerParams(
            dimension_semantics=("parallel", "arbitrary")
        ),
    )(x_bf16, w_bf16, bias_full)


if __name__ == "__main__":
    # Small shapes consistent with the module's forward.
    batch = 16
    feature_dim = 128
    num_classes = 256
    world_size = 2
    n_per_rank = num_classes // world_size

    key = jax.random.PRNGKey(0)
    k_x, k_b, *k_w = jax.random.split(key, 2 + world_size)

    # Per-rank weights (torch.randn_like -> standard normal), shape [N/ws, F].
    rank_weights = [
        jax.random.normal(k_w[r], (n_per_rank, feature_dim), dtype=jnp.float32)
        for r in range(world_size)
    ]
    # Only rank 0 has a bias (nn.Linear default init ~ U(-1/sqrt(F), 1/sqrt(F))).
    bound = 1.0 / (feature_dim ** 0.5)
    bias_rank0 = jax.random.uniform(
        k_b, (n_per_rank,), minval=-bound, maxval=bound, dtype=jnp.float32
    )

    # all_gather along last dim == concatenate shard outputs == one matmul
    # against the concatenated (transposed) weight.
    w_full = jnp.concatenate([w.T for w in rank_weights], axis=-1)  # [F, N]
    bias_full = jnp.concatenate(
        [bias_rank0] + [jnp.zeros((n_per_rank,), jnp.float32)] * (world_size - 1)
    ).reshape(1, num_classes)                                       # [1, N]

    x = jax.random.normal(k_x, (batch, feature_dim), dtype=jnp.float32)

    y = column_linear(x, w_full, bias_full)
    y = jax.block_until_ready(y)

    # Tight check against a reference using the same bf16 cast / f32 accumulate.
    y_ref_bf16 = (
        jnp.dot(
            x.astype(jnp.bfloat16),
            w_full.astype(jnp.bfloat16),
            preferred_element_type=jnp.float32,
        )
        + bias_full
    )
    # Looser sanity check against the exact f32 distributed-forward semantics.
    ref_shards = [x @ rank_weights[r].T for r in range(world_size)]
    ref_shards[0] = ref_shards[0] + bias_rank0[None, :]
    y_ref_f32 = jnp.concatenate(ref_shards, axis=-1)

    assert y.shape == (batch, num_classes)
    assert jnp.allclose(y, y_ref_bf16, atol=1e-3, rtol=1e-3)
    assert jnp.allclose(y, y_ref_f32, atol=0.25, rtol=5e-2)

    print("KERNEL_OK")
</pallas_src>

<mosaic_0001>
module attributes {stable_mosaic.version = 11 : i64} {
  func.func @_column_linear_kernel(%arg0: i32, %arg1: i32, %arg2: memref<16x128xbf16, #tpu.memory_space<vmem>>, %arg3: memref<128x128xbf16, #tpu.memory_space<vmem>>, %arg4: memref<1x128xf32, #tpu.memory_space<vmem>>, %arg5: memref<16x128xf32, #tpu.memory_space<vmem>>) attributes {dimension_semantics = [#tpu.dimension_semantics<parallel>, #tpu.dimension_semantics<arbitrary>], iteration_bounds = array<i64: 2, 1>, scalar_prefetch = 0 : i64, scratch_operands = 0 : i64, tpu.core_type = #tpu.core_type<tc>, window_params = [{transform_indices = @transform_0, window_bounds = array<i64: 16, 128>}, {transform_indices = @transform_1, window_bounds = array<i64: 128, 128>}, {transform_indices = @transform_2, window_bounds = array<i64: 1, 128>}, {transform_indices = @transform_3, window_bounds = array<i64: 16, 128>}]} {
    %c0_i32 = arith.constant 0 : i32
    %0 = arith.cmpi eq, %arg1, %c0_i32 : i32
    %1 = arith.extui %0 : i1 to i32
    %c0_i32_0 = arith.constant 0 : i32
    %2 = arith.cmpi ne, %1, %c0_i32_0 : i32
    scf.if %2 {
      %c0_8 = arith.constant 0 : index
      %c0_9 = arith.constant 0 : index
      %9 = vector.load %arg4[%c0_8, %c0_9] : memref<1x128xf32, #tpu.memory_space<vmem>>, vector<1x128xf32>
      %10 = vector.shape_cast %9 : vector<1x128xf32> to vector<1x128xf32>
      %11 = vector.broadcast %10 : vector<1x128xf32> to vector<16x128xf32>
      %c0_10 = arith.constant 0 : index
      %c0_11 = arith.constant 0 : index
      %12 = vector.load %arg5[%c0_10, %c0_11] : memref<16x128xf32, #tpu.memory_space<vmem>>, vector<16x128xf32>
      tpu.vector_store %arg5[%c0_10, %c0_11], %11 {strides = array<i32>} : memref<16x128xf32, #tpu.memory_space<vmem>>, vector<16x128xf32>,
    } else {
    }
    %c0 = arith.constant 0 : index
    %c0_1 = arith.constant 0 : index
    %3 = vector.load %arg5[%c0, %c0_1] : memref<16x128xf32, #tpu.memory_space<vmem>>, vector<16x128xf32>
    %c0_2 = arith.constant 0 : index
    %c0_3 = arith.constant 0 : index
    %4 = vector.load %arg2[%c0_2, %c0_3] : memref<16x128xbf16, #tpu.memory_space<vmem>>, vector<16x128xbf16>
    %c0_4 = arith.constant 0 : index
    %c0_5 = arith.constant 0 : index
    %5 = vector.load %arg3[%c0_4, %c0_5] : memref<128x128xbf16, #tpu.memory_space<vmem>>, vector<128x128xbf16>
    %cst = arith.constant dense<0.000000e+00> : vector<16x128xf32>
    %6 = tpu.matmul %4, %5, %cst {dimension_numbers = #tpu.dot_dimension_numbers<[1], [0], [0], [1], [0, 0, 1, 1], [], []>} : vector<16x128xbf16>, vector<128x128xbf16>, vector<16x128xf32> -> vector<16x128xf32>
    %7 = arith.addf %3, %6 : vector<16x128xf32>
    %c0_6 = arith.constant 0 : index
    %c0_7 = arith.constant 0 : index
    %8 = vector.load %arg5[%c0_6, %c0_7] : memref<16x128xf32, #tpu.memory_space<vmem>>, vector<16x128xf32>
    tpu.vector_store %arg5[%c0_6, %c0_7], %7 {strides = array<i32>} : memref<16x128xf32, #tpu.memory_space<vmem>>, vector<16x128xf32>,
    return
  }
  func.func @transform_0(%arg0: i32, %arg1: i32) -> (i32, i32) {
    %c0_i32 = arith.constant 0 : i32
    %c0_i32_0 = arith.constant 0 : i32
    return %c0_i32, %arg1 : i32, i32
  }
  func.func @transform_1(%arg0: i32, %arg1: i32) -> (i32, i32) {
    %c0_i32 = arith.constant 0 : i32
    return %arg1, %arg0 : i32, i32
  }
  func.func @transform_2(%arg0: i32, %arg1: i32) -> (i32, i32) {
    %c0_i32 = arith.constant 0 : i32
    %c0_i32_0 = arith.constant 0 : i32
    return %c0_i32, %arg0 : i32, i32
  }
  func.func @transform_3(%arg0: i32, %arg1: i32) -> (i32, i32) {
    %c0_i32 = arith.constant 0 : i32
    %c0_i32_0 = arith.constant 0 : i32
    return %c0_i32, %arg0 : i32, i32
  }
}

</mosaic_0001>

<llo_original>
// kernel: column_linear.1
$region0: #{column_linear.1}
  #allocation0 [shape = 'u32[]', space=smem, size = 0x4, offset = 0x4, fixed_abs, tag = 'smem constant byte address 0x4 - core index']
  #allocation1 [shape = 'u32[144,128]{1,0:T(1,128)}', space=vmem, size = 0x12000, scoped, tag = 'internal scratch']
  %s0 = inlined_call_operand.vmem [shape: bf16[16,128], index: 0, kind: input, shape index: {}]
  %s1 = inlined_call_operand.vmem [shape: bf16[128,256], index: 1, kind: input, shape index: {}]
  %s2 = inlined_call_operand.vmem [shape: f32[1,256], index: 2, kind: input, shape index: {}]
  %s3 = inlined_call_operand.hbm [shape: f32[16,256], index: 3, kind: output, shape index: {}]
  %s4 = sld [smem:[#allocation0]]
  $region90: #{column_linear.1} parent=0
    _
  %s6 = ssub.s32 1, %s4
  %s7 = scalar_select 0, %s6, %s4
  $region1: #{column_linear.1} parent=0
    #allocation2 [shape = 'u8[65536]{0}', space=vmem, size = 0x10000, scoped, tag = 'input window, operand 1']
    #allocation3 [shape = 'u8[16384]{0}', space=vmem, size = 0x4000, scoped, tag = 'output window, operand 0']
    #allocation4 [shape = 's32[2]{0}', space=sflag, size = 0x8, scoped, tag = 'scoped memory for column_linear.1']
    %8 = vsyncpa [#allocation4], 0
    %s9 = scalar_lea.sflag [#allocation4], 1
    %10 = vsyncpa %s9, 0
    loop: start=0, step=1, limit=4
    $region2: #{column_linear.1} parent=1 // loop_pre_header
      _
    $region3: #{column_linear.1} parent=1 // loop_header
      %s12 = sphi 0, %s16
      %p13 = scmp.ge.s32.totalorder %s12, 4
      %s19 = sphi 0, %s31
      %s20 = sphi 0, %s27
      %s21 = sphi 0, %s19
      %s22 = sphi 0, %s20
      %s23 = sphi 0, %s21
      %s24 = sphi 0, %s22
      %s34 = sphi 0, %s36
      %s37 = sphi 0, %s34
      %s38 = sphi 0, %s37
      %s54 = sphi 0, %s38
      %s62 = sphi 0, %s64
      %s65 = sphi 0, %s62
      %s66 = sphi 0, %s65
      %s82 = sphi 0, %s66
      %s88 = sphi 0, %s90
      %s91 = sphi 0, %s88
      %s92 = sphi 0, %s91
      %s108 = sphi 0, %s92
      %s114 = sphi 0, %s116
      %s117 = sphi 0, %s114
      %s118 = sphi 0, %s117
      %s134 = sphi 0, %s118
    $region4: #{column_linear.1} parent=1 // loop_header_branch
      %15 = sbr.rel (%p13) target = $region8
    $region5: #{column_linear.1} parent=1 // loop_body
      %s17 = ssub.s32 %s12, 1
      %s18 = ssub.s32 %s12, 2
      %s25 = sadd.s32 1, %s20
      %p26 = scmp.ge.s32.totalorder %s25, 1
      %s27 = scalar_select %p26, 0, %s25
      %s28 = sadd.s32 1, %s19
      %s29 = scalar_select %p26, %s28, %s19
      %p30 = scmp.ge.s32.totalorder %s29, 2
      %s31 = scalar_select %p30, 0, %s29
      %s32 = ssub.s32 %s20, %s27
      %p33 = scmp.eq.s32.totalorder %s32, 0
      %s35 = sadd.s32 %s34, 1
      %s36 = scalar_select %p33, %s34, %s35
      %p39 = pneg %p33
      %p40 = scmp.eq.s32.totalorder %s12, 1
      %p41 = por %p39, %p40
      %p42 = scmp.ne.s32.totalorder %s34, %s37
      %p43 = scmp.eq.s32.totalorder %s12, 0
      %p44 = por %p42, %p43
      %p45 = scmp.ne.s32.totalorder %s34, %s37
      %p46 = scmp.eq.s32.totalorder %s17, 1
      %p47 = por %p45, %p46
      %p48 = scmp.ne.s32.totalorder %s37, %s38
      %p49 = scmp.eq.s32.totalorder %s17, 0
      %p50 = por %p48, %p49
      %p51 = scmp.ne.s32.totalorder %s37, %s38
      %p52 = scmp.eq.s32.totalorder %s18, 1
      %p53 = por %p51, %p52
      %p55 = scmp.ne.s32.totalorder %s38, %s54
      %p56 = scmp.eq.s32.totalorder %s18, 0
      %p57 = por %p55, %p56
      %s58 = ssub.s32 %s20, %s27
      %s59 = ssub.s32 %s19, %s31
      %s60 = sor.u32 %s58, %s59
      %p61 = scmp.eq.s32.totalorder %s60, 0
      %s63 = sadd.s32 %s62, 1
      %s64 = scalar_select %p61, %s62, %s63
      %p67 = pneg %p61
      %p68 = scmp.eq.s32.totalorder %s12, 1
      %p69 = por %p67, %p68
      %p70 = scmp.ne.s32.totalorder %s62, %s65
      %p71 = scmp.eq.s32.totalorder %s12, 0
      %p72 = por %p70, %p71
      %p73 = scmp.ne.s32.totalorder %s62, %s65
      %p74 = scmp.eq.s32.totalorder %s17, 1
      %p75 = por %p73, %p74
      %p76 = scmp.ne.s32.totalorder %s65, %s66
      %p77 = scmp.eq.s32.totalorder %s17, 0
      %p78 = por %p76, %p77
      %p79 = scmp.ne.s32.totalorder %s65, %s66
      %p80 = scmp.eq.s32.totalorder %s18, 1
      %p81 = por %p79, %p80
      %p83 = scmp.ne.s32.totalorder %s66, %s82
      %p84 = scmp.eq.s32.totalorder %s18, 0
      %p85 = por %p83, %p84
      %s86 = ssub.s32 %s19, %s31
      %p87 = scmp.eq.s32.totalorder %s86, 0
      %s89 = sadd.s32 %s88, 1
      %s90 = scalar_select %p87, %s88, %s89
      %p93 = pneg %p87
      %p94 = scmp.eq.s32.totalorder %s12, 1
      %p95 = por %p93, %p94
      %p96 = scmp.ne.s32.totalorder %s88, %s91
      %p97 = scmp.eq.s32.totalorder %s12, 0
      %p98 = por %p96, %p97
      %p99 = scmp.ne.s32.totalorder %s88, %s91
      %p100 = scmp.eq.s32.totalorder %s17, 1
      %p101 = por %p99, %p100
      %p102 = scmp.ne.s32.totalorder %s91, %s92
      %p103 = scmp.eq.s32.totalorder %s17, 0
      %p104 = por %p102, %p103
      %p105 = scmp.ne.s32.totalorder %s91, %s92
      %p106 = scmp.eq.s32.totalorder %s18, 1
      %p107 = por %p105, %p106
      %p109 = scmp.ne.s32.totalorder %s92, %s108
      %p110 = scmp.eq.s32.totalorder %s18, 0
      %p111 = por %p109, %p110
      %s112 = ssub.s32 %s19, %s31
      %p113 = scmp.eq.s32.totalorder %s112, 0
      %s115 = sadd.s32 %s114, 1
      %s116 = scalar_select %p113, %s114, %s115
      %p119 = pneg %p113
      %p120 = scmp.eq.s32.totalorder %s12, 1
      %p121 = por %p119, %p120
      %p122 = scmp.ne.s32.totalorder %s114, %s117
      %p123 = scmp.eq.s32.totalorder %s12, 0
      %p124 = por %p122, %p123
      %p125 = scmp.ne.s32.totalorder %s114, %s117
      %p126 = scmp.eq.s32.totalorder %s17, 1
      %p127 = por %p125, %p126
      %p128 = scmp.ne.s32.totalorder %s117, %s118
      %p129 = scmp.eq.s32.totalorder %s17, 0
      %p130 = por %p128, %p129
      %p131 = scmp.ne.s32.totalorder %s117, %s118
      %p132 = scmp.eq.s32.totalorder %s18, 1
      %p133 = por %p131, %p132
      %p135 = scmp.ne.s32.totalorder %s118, %s134
      %p136 = scmp.eq.s32.totalorder %s18, 0
      %p137 = por %p135, %p136
      %p138 = scmp.le.s32.totalorder 1, %s12
      %p139 = scmp.lt.s32.totalorder %s12, 3
      %p140 = pnand %p138, %p139
      %p141 = pneg %p140
      // Predicated region
      $region9: #{column_linear.1} parent=5 // pred_check
        _
      $region10: #{column_linear.1} parent=5 // pred_check_branch
        %143 = sbr.rel (%p140) target = $region12
      $region11: #{column_linear.1} parent=5 // pred_region
        %s144 = ssub.s32 %s12, 1
        // Predicated region
        $region13: #{column_linear.1} parent=11 // pred_check
          %p145 = pneg %p50
        $region14: #{column_linear.1} parent=11 // pred_check_branch
          %147 = sbr.rel (%p145) target = $region16
        $region15: #{column_linear.1} parent=11 // pred_region
          %p148 = scmp.lt.s32.totalorder %s22, 0
          %s149 = scalar_select %p148, %s22, 0
          %s150 = smul.addr %s149, 4
          %s151 = scalar_lea.vmem %s0, %s150
        $region16: #{column_linear.1} parent=11 // pred_fallthru
          _
      $region12: #{column_linear.1} parent=5 // pred_fallthru
        _
      %p152 = scmp.lt.s32.totalorder %s12, 2
      // Predicated region
      $region17: #{column_linear.1} parent=5 // pred_check
        %p153 = pneg %p152
      $region18: #{column_linear.1} parent=5 // pred_check_branch
        %155 = sbr.rel (%p153) target = $region20
      $region19: #{column_linear.1} parent=5 // pred_region
        // Predicated region
        $region21: #{column_linear.1} parent=19 // pred_check
          %p156 = pneg %p72
        $region22: #{column_linear.1} parent=19 // pred_check_branch
          %158 = sbr.rel (%p156) target = $region24
        $region23: #{column_linear.1} parent=19 // pred_region
          %s159 = sand.u32 %s62, 1
          %s160 = sand.u32 %s62, 1
          %s161 = smul.addr %s160, 64
          %s162 = scalar_lea.vmem [#allocation2], %s161
          %s163 = smul.u32 16, %s20
          %s164 = smul.addr %s163, 2
          %s165 = sadd.s32 %s19, %s164
          %s166 = smul.addr %s165, 4
          %s167 = scalar_lea.vmem %s1, %s166
          // Predicated region
          $region25: #{column_linear.1} parent=23 // pred_check
            _
          $region26: #{column_linear.1} parent=23 // pred_check_branch
            %169 = sbr.rel (0) target = $region28
          $region27: #{column_linear.1} parent=23 // pred_region
            // Predicated region
            $region29: #{column_linear.1} parent=27 // pred_check
              _
            $region30: #{column_linear.1} parent=27 // pred_check_branch
              %171 = sbr.rel target = $region32
            $region31: #{column_linear.1} parent=27 // pred_region
              // Predicated region
              $region44: #{column_linear.1} parent=31 // pred_check
                _
              $region45: #{column_linear.1} parent=31 // pred_check_branch
                %216 = sbr.rel (0) target = $region47
              $region46: #{column_linear.1} parent=31 // pred_region
                loop: start=0, step=1, limit=1
                $region48: #{column_linear.1} parent=46 // loop_pre_header
                  _
                $region49: #{column_linear.1} parent=46 // loop_header
                  %s218 = sphi 0, %s222
                  %p219 = scmp.ge.s32.totalorder %s218, 1
                  %s223 = sphi %s167, %s167
                  %s224 = sphi %s162, %s162
                $region50: #{column_linear.1} parent=46 // loop_header_branch
                  %221 = sbr.rel (%p219) target = $region54
                $region51: #{column_linear.1} parent=46 // loop_body
                  _
                $region52: #{column_linear.1} parent=46 // loop_footer
                  %s222 = sadd.s32 1, %s218
                $region53: #{column_linear.1} parent=46 // loop_footer_branch
                  %217 = sbr.rel target = $region49
                $region54: #{column_linear.1} parent=46 // loop_exit
                  _
                loop: start=0, step=1, limit=1
                $region55: #{column_linear.1} parent=46 // loop_pre_header
                  _
                $region56: #{column_linear.1} parent=46 // loop_header
                  %s227 = sphi 0, %s231
                  %p228 = scmp.ge.s32.totalorder %s227, 1
                  %s232 = sphi %s167, %s167
                  %s233 = sphi %s162, %s162
                $region57: #{column_linear.1} parent=46 // loop_header_branch
                  %230 = sbr.rel (%p228) target = $region61
                $region58: #{column_linear.1} parent=46 // loop_body
                  %v234 = vld [vmem:[%s232] sm:$0xf]
                  %235 = vst [vmem:[%s233] sm:$0xf] %v234
                  %v236 = vld [vmem:[%s232 + $0x8] sm:$0xf]
                  %237 = vst [vmem:[%s233 + $0x4] sm:$0xf] %v236
                  %v238 = vld [vmem:[%s232 + $0x10] sm:$0xf]
                  %239 = vst [vmem:[%s233 + $0x8] sm:$0xf] %v238
                  %v240 = vld [vmem:[%s232 + $0x18] sm:$0xf]
                  %241 = vst [vmem:[%s233 + $0xc] sm:$0xf] %v240
                  %v242 = vld [vmem:[%s232 + $0x20] sm:$0xf]
                  %243 = vst [vmem:[%s233 + $0x10] sm:$0xf] %v242
                  %v244 = vld [vmem:[%s232 + $0x28] sm:$0xf]
                  %245 = vst [vmem:[%s233 + $0x14] sm:$0xf] %v244
                  %v246 = vld [vmem:[%s232 + $0x30] sm:$0xf]
                  %247 = vst [vmem:[%s233 + $0x18] sm:$0xf] %v246
                  %v248 = vld [vmem:[%s232 + $0x38] sm:$0xf]
                  %249 = vst [vmem:[%s233 + $0x1c] sm:$0xf] %v248
                  %v250 = vld [vmem:[%s232 + $0x40] sm:$0xf]
                  %251 = vst [vmem:[%s233 + $0x20] sm:$0xf] %v250
                  %v252 = vld [vmem:[%s232 + $0x48] sm:$0xf]
                  %253 = vst [vmem:[%s233 + $0x24] sm:$0xf] %v252
                  %v254 = vld [vmem:[%s232 + $0x50] sm:$0xf]
                  %255 = vst [vmem:[%s233 + $0x28] sm:$0xf] %v254
                  %v256 = vld [vmem:[%s232 + $0x58] sm:$0xf]
                  %257 = vst [vmem:[%s233 + $0x2c] sm:$0xf] %v256
                  %v258 = vld [vmem:[%s232 + $0x60] sm:$0xf]
                  %259 = vst [vmem:[%s233 + $0x30] sm:$0xf] %v258
                  %v260 = vld [vmem:[%s232 + $0x68] sm:$0xf]
                  %261 = vst [vmem:[%s233 + $0x34] sm:$0xf] %v260
                  %v262 = vld [vmem:[%s232 + $0x70] sm:$0xf]
                  %263 = vst [vmem:[%s233 + $0x38] sm:$0xf] %v262
                  %v264 = vld [vmem:[%s232 + $0x78] sm:$0xf]
                  %265 = vst [vmem:[%s233 + $0x3c] sm:$0xf] %v264
                $region59: #{column_linear.1} parent=46 // loop_footer
                  %s231 = sadd.s32 1, %s227
                $region60: #{column_linear.1} parent=46 // loop_footer_branch
                  %226 = sbr.rel target = $region56
                $region61: #{column_linear.1} parent=46 // loop_exit
                  _
              $region47: #{column_linear.1} parent=31 // pred_fallthru
                _
            $region32: #{column_linear.1} parent=27 // pred_fallthru
              _
            // Predicated region
            $region33: #{column_linear.1} parent=27 // pred_check
              _
            $region34: #{column_linear.1} parent=27 // pred_check_branch
              %173 = sbr.rel (0) target = $region36
            $region35: #{column_linear.1} parent=27 // pred_region
              loop: start=0, step=1, limit=1
              $region37: #{column_linear.1} parent=35 // loop_pre_header
                _
              $region38: #{column_linear.1} parent=35 // loop_header
                %s176 = sphi 0, %s180
                %p177 = scmp.ge.s32.totalorder %s176, 1
                %s181 = sphi %s167, %s167
                %s182 = sphi %s162, %s162
              $region39: #{column_linear.1} parent=35 // loop_header_branch
                %179 = sbr.rel (%p177) target = $region43
              $region40: #{column_linear.1} parent=35 // loop_body
                %v183 = vld [vmem:[%s181] sm:$0xf]
                %184 = vst [vmem:[%s182] sm:$0xf] %v183
                %v185 = vld [vmem:[%s181 + $0x8] sm:$0xf]
                %186 = vst [vmem:[%s182 + $0x4] sm:$0xf] %v185
                %v187 = vld [vmem:[%s181 + $0x10] sm:$0xf]
                %188 = vst [vmem:[%s182 + $0x8] sm:$0xf] %v187
                %v189 = vld [vmem:[%s181 + $0x18] sm:$0xf]
                %190 = vst [vmem:[%s182 + $0xc] sm:$0xf] %v189
                %v191 = vld [vmem:[%s181 + $0x20] sm:$0xf]
                %192 = vst [vmem:[%s182 + $0x10] sm:$0xf] %v191
                %v193 = vld [vmem:[%s181 + $0x28] sm:$0xf]
                %194 = vst [vmem:[%s182 + $0x14] sm:$0xf] %v193
                %v195 = vld [vmem:[%s181 + $0x30] sm:$0xf]
                %196 = vst [vmem:[%s182 + $0x18] sm:$0xf] %v195
                %v197 = vld [vmem:[%s181 + $0x38] sm:$0xf]
                %198 = vst [vmem:[%s182 + $0x1c] sm:$0xf] %v197
                %v199 = vld [vmem:[%s181 + $0x40] sm:$0xf]
                %200 = vst [vmem:[%s182 + $0x20] sm:$0xf] %v199
                %v201 = vld [vmem:[%s181 + $0x48] sm:$0xf]
                %202 = vst [vmem:[%s182 + $0x24] sm:$0xf] %v201
                %v203 = vld [vmem:[%s181 + $0x50] sm:$0xf]
                %204 = vst [vmem:[%s182 + $0x28] sm:$0xf] %v203
                %v205 = vld [vmem:[%s181 + $0x58] sm:$0xf]
                %206 = vst [vmem:[%s182 + $0x2c] sm:$0xf] %v205
                %v207 = vld [vmem:[%s181 + $0x60] sm:$0xf]
                %208 = vst [vmem:[%s182 + $0x30] sm:$0xf] %v207
                %v209 = vld [vmem:[%s181 + $0x68] sm:$0xf]
                %210 = vst [vmem:[%s182 + $0x34] sm:$0xf] %v209
                %v211 = vld [vmem:[%s181 + $0x70] sm:$0xf]
                %212 = vst [vmem:[%s182 + $0x38] sm:$0xf] %v211
                %v213 = vld [vmem:[%s181 + $0x78] sm:$0xf]
                %214 = vst [vmem:[%s182 + $0x3c] sm:$0xf] %v213
              $region41: #{column_linear.1} parent=35 // loop_footer
                %s180 = sadd.s32 1, %s176
              $region42: #{column_linear.1} parent=35 // loop_footer_branch
                %175 = sbr.rel target = $region38
              $region43: #{column_linear.1} parent=35 // loop_exit
                _
            $region36: #{column_linear.1} parent=27 // pred_fallthru
              _
          $region28: #{column_linear.1} parent=23 // pred_fallthru
            _
          %266 = vnop
        $region24: #{column_linear.1} parent=19 // pred_fallthru
          _
        // Predicated region
        $region62: #{column_linear.1} parent=19 // pred_check
          %p267 = pneg %p98
        $region63: #{column_linear.1} parent=19 // pred_check_branch
          %269 = sbr.rel (%p267) target = $region65
        $region64: #{column_linear.1} parent=19 // pred_region
          %p270 = scmp.lt.s32.totalorder %s19, 1
          %s271 = scalar_select %p270, %s19, 1
          %s272 = scalar_lea.vmem %s2, %s271
        $region65: #{column_linear.1} parent=19 // pred_fallthru
          _
      $region20: #{column_linear.1} parent=5 // pred_fallthru
        _
      %p273 = scmp.le.s32.totalorder 1, %s12
      %p274 = scmp.lt.s32.totalorder %s12, 3
      %p275 = pnand %p273, %p274
      %p276 = pneg %p275
      // Predicated region
      $region66: #{column_linear.1} parent=5 // pred_check
        _
      $region67: #{column_linear.1} parent=5 // pred_check_branch
        %278 = sbr.rel (%p275) target = $region69
      $region68: #{column_linear.1} parent=5 // pred_region
        %s279 = ssub.s32 %s12, 1
        %s280 = sand.u32 %s65, 1
        %s281 = sand.u32 %s65, 1
        %s282 = smul.addr %s281, 64
        %s283 = scalar_lea.vmem [#allocation2], %s282
        // Predicated region
        $region70: #{column_linear.1} parent=68 // pred_check
          %p284 = pneg %p78
        $region71: #{column_linear.1} parent=68 // pred_check_branch
          %286 = sbr.rel (%p284) target = $region73
        $region72: #{column_linear.1} parent=68 // pred_region
          _
        $region73: #{column_linear.1} parent=68 // pred_fallthru
          _
        %p287 = scmp.lt.s32.totalorder %s22, 0
        %s288 = scalar_select %p287, %s22, 0
        %s289 = smul.addr %s288, 4
        %s290 = scalar_lea.vmem %s0, %s289
        %p291 = pneg %p50
        %p292 = pneg %p47
        %s293 = sand.u32 %s65, 1
        %s294 = sand.u32 %s65, 1
        %s295 = smul.addr %s294, 64
        %s296 = scalar_lea.vmem [#allocation2], %s295
        %p297 = pneg %p78
        %p298 = pneg %p75
        %p299 = scmp.lt.s32.totalorder %s21, 1
        %s300 = scalar_select %p299, %s21, 1
        %s301 = scalar_lea.vmem %s2, %s300
        %p302 = pneg %p104
        %p303 = pneg %p101
        %p304 = pneg %p130
        %p305 = pneg %p127
        %s306 = sand.u32 %s117, 1
        %s307 = scalar_lea.sflag [#allocation4], %s306
        %s308 = sand.u32 %s117, 1
        %s309 = smul.addr %s308, 16
        %s310 = scalar_lea.vmem [#allocation3], %s309
        %p311 = scmp.lt.s32.totalorder %s22, 0
        %s312 = scalar_select %p311, %s22, 0
        %s313 = smul.addr %s312, 4
        %s314 = scalar_lea.vmem %s0, %s313
        %s315 = smul.u32 16, %s22
        %p316 = scmp.lt.s32.totalorder %s21, 1
        %s317 = scalar_select %p316, %s21, 1
        %s318 = scalar_lea.vmem %s2, %s317
        %p320 = scmp.eq.s32.totalorder %s22, 0
        // Predicated region
        $region74: #{column_linear.1} parent=68 // pred_check
          %p321 = pneg %p320
        $region75: #{column_linear.1} parent=68 // pred_check_branch
          %323 = sbr.rel (%p321) target = $region77
        $region76: #{column_linear.1} parent=68 // pred_region
          %v324 = vld [vmem:[%s318] sm:$0x1]
          %v326 = vlaneseq
          %v327 = vshrl.u32 %v326, 7
          %v328 = vsub.s32 0, %v327
          %v329 = vrot.slane %v324, %v328
          %331 = vst [vmem:[%s310] sm:$0xff] %v329
          %332 = vst [vmem:[%s310 + $0x8] sm:$0xff] %v329
        $region77: #{column_linear.1} parent=68 // pred_fallthru
          _
        %v333 = vld [vmem:[%s310] sm:$0xff]
        %v334 = vld [vmem:[%s310 + $0x8] sm:$0xff]
        %v335 = vld [vmem:[%s314] sm:$0xf]
        %v336 = vld [vmem:[%s314 + $0x4] sm:$0xf]
        %v337 = vld [vmem:[%s283] sm:$0xf]
        %v338 = vld [vmem:[%s283 + $0x4] sm:$0xf]
        %v339 = vld [vmem:[%s283 + $0x8] sm:$0xf]
        %v340 = vld [vmem:[%s283 + $0xc] sm:$0xf]
        %v341 = vld [vmem:[%s283 + $0x10] sm:$0xf]
        %v342 = vld [vmem:[%s283 + $0x14] sm:$0xf]
        %v343 = vld [vmem:[%s283 + $0x18] sm:$0xf]
        %v344 = vld [vmem:[%s283 + $0x1c] sm:$0xf]
        %v345 = vld [vmem:[%s283 + $0x20] sm:$0xf]
        %v346 = vld [vmem:[%s283 + $0x24] sm:$0xf]
        %v347 = vld [vmem:[%s283 + $0x28] sm:$0xf]
        %v348 = vld [vmem:[%s283 + $0x2c] sm:$0xf]
        %v349 = vld [vmem:[%s283 + $0x30] sm:$0xf]
        %v350 = vld [vmem:[%s283 + $0x34] sm:$0xf]
        %v351 = vld [vmem:[%s283 + $0x38] sm:$0xf]
        %v352 = vld [vmem:[%s283 + $0x3c] sm:$0xf]
        %v355 = vunpack.c.l.b16 %v335
        %v356 = vunpack.c.l.b16 %v336
        %v357 = vpack.c.b16 %v356, %v355
        %v375 = vunpack.c.l.b16 %v337
        %v376 = vunpack.c.l.b16 %v338
        %v377 = vunpack.c.l.b16 %v339
        %v378 = vunpack.c.l.b16 %v340
        %v379 = vunpack.c.l.b16 %v341
        %v380 = vunpack.c.l.b16 %v342
        %v381 = vunpack.c.l.b16 %v343
        %v382 = vunpack.c.l.b16 %v344
        %v383 = vunpack.c.l.b16 %v345
        %v384 = vunpack.c.l.b16 %v346
        %v385 = vunpack.c.l.b16 %v347
        %v386 = vunpack.c.l.b16 %v348
        %v387 = vunpack.c.l.b16 %v349
        %v388 = vunpack.c.l.b16 %v350
        %v389 = vunpack.c.l.b16 %v351
        %v390 = vunpack.c.l.b16 %v352
        %v391 = vpack.c.b16 %v376, %v375
        %v392 = vpack.c.b16 %v378, %v377
        %v393 = vpack.c.b16 %v380, %v379
        %v394 = vpack.c.b16 %v382, %v381
        %v395 = vpack.c.b16 %v384, %v383
        %v396 = vpack.c.b16 %v386, %v385
        %v397 = vpack.c.b16 %v388, %v387
        %v398 = vpack.c.b16 %v390, %v389
        %407 = vmatprep.subr.bf16.mxu0 0
        %408 = vmatpush1.bf16.msra.mxu0 %v391
        %409 = vmatprep.subr.bf16.mxu0 0
        %410 = vmatpush1.bf16.msra.mxu0 %v392
        %411 = vmatprep.subr.bf16.mxu0 0
        %412 = vmatpush1.bf16.msra.mxu0 %v393
        %413 = vmatprep.subr.bf16.mxu0 0
        %414 = vmatpush1.bf16.msra.mxu0 %v394
        %415 = vmatprep.subr.bf16.mxu0 0
        %416 = vmatpush1.bf16.msra.mxu0 %v395
        %417 = vmatprep.subr.bf16.mxu0 0
        %418 = vmatpush1.bf16.msra.mxu0 %v396
        %419 = vmatprep.subr.bf16.mxu0 0
        %420 = vmatpush1.bf16.msra.mxu0 %v397
        %421 = vmatprep.subr.bf16.mxu0 0
        %422 = vmatpush1.bf16.msra.mxu0 %v398
        %423 = vmatprep.subr.bf16.mxu0 0
        %424 = vmatpush1.bf16.msra.mxu0 0
        %425 = vmatprep.subr.bf16.mxu0 0
        %426 = vmatpush1.bf16.msra.mxu0 0
        %427 = vmatprep.subr.bf16.mxu0 0
        %428 = vmatpush1.bf16.msra.mxu0 0
        %429 = vmatprep.subr.bf16.mxu0 0
        %430 = vmatpush1.bf16.msra.mxu0 0
        %431 = vmatprep.subr.bf16.mxu0 0
        %432 = vmatpush1.bf16.msra.mxu0 0
        %433 = vmatprep.subr.bf16.mxu0 0
        %434 = vmatpush1.bf16.msra.mxu0 0
        %435 = vmatprep.subr.bf16.mxu0 0
        %436 = vmatpush1.bf16.msra.mxu0 0
        %437 = vmatprep.subr.bf16.mxu0 0
        %438 = vmatpush1.bf16.msra.mxu0 0
        %439 = vmatprep.mubr.bf16.mxu0 0
        %440 = vmatmul.mubr.bf16.gmra.mrb[0].mxu0 %v357
        %v441 = vpop.f32.mrb[0].mxu0
        %v442 = vadd.f32 0.0, %v441
        %v443 = vpop.f32.mrb[0].mxu0
        %v444 = vpop.f32.mrb[0].mxu0
        %v445 = vadd.f32 0.0, %v444
        %v446 = vpop.f32.mrb[0].mxu0
        %447 = vdwg.mxu0
        %v448 = vadd.f32 %v333, %v442
        %v449 = vadd.f32 %v334, %v445
        %450 = vst [vmem:[%s310] sm:$0xff] %v448
        %451 = vst [vmem:[%s310 + $0x8] sm:$0xff] %v449
        %s452 = sand.u32 %s117, 1
        %s453 = scalar_lea.sflag [#allocation4], %s452
        %s454 = sand.u32 %s117, 1
        %s455 = smul.addr %s454, 16
        %s456 = scalar_lea.vmem [#allocation3], %s455
        // Predicated region
        $region78: #{column_linear.1} parent=68 // pred_check
          %p457 = pneg %p127
        $region79: #{column_linear.1} parent=68 // pred_check_branch
          %459 = sbr.rel (%p457) target = $region81
        $region80: #{column_linear.1} parent=68 // pred_region
          %s461 = ssub.s32 256, 256
          %462 = vsyncadd %s453, %s461
          %s463 = smul.addr %s21, 128
          %s464 = scalar_lea.hbm %s3, %s463
          %s465 = sshll.u32 %s456, 4
          %s466 = int_to_ptr.vmem [resolvable:$true] %s465
          %471 = dma.vmem_to_hbm [thread:$0]  %s466, 256, %s464, %s453, 128, 256, 8
        $region81: #{column_linear.1} parent=68 // pred_fallthru
          _
      $region69: #{column_linear.1} parent=5 // pred_fallthru
        _
      %p472 = scmp.le.s32.totalorder 2, %s12
      // Predicated region
      $region82: #{column_linear.1} parent=5 // pred_check
        %p473 = pneg %p472
      $region83: #{column_linear.1} parent=5 // pred_check_branch
        %475 = sbr.rel (%p473) target = $region85
      $region84: #{column_linear.1} parent=5 // pred_region
        %s476 = ssub.s32 %s12, 2
        // Predicated region
        $region86: #{column_linear.1} parent=84 // pred_check
          %p477 = pneg %p133
        $region87: #{column_linear.1} parent=84 // pred_check_branch
          %479 = sbr.rel (%p477) target = $region89
        $region88: #{column_linear.1} parent=84 // pred_region
          %s480 = sand.u32 %s118, 1
          %s481 = scalar_lea.sflag [#allocation4], %s480
          %s482 = sand.u32 %s118, 1
          %s483 = smul.addr %s482, 16
          %s484 = scalar_lea.vmem [#allocation3], %s483
          %485 = dma.done %s481, 256
        $region89: #{column_linear.1} parent=84 // pred_fallthru
          _
      $region85: #{column_linear.1} parent=5 // pred_fallthru
        _
    $region6: #{column_linear.1} parent=1 // loop_footer
      %s16 = sadd.s32 1, %s12
    $region7: #{column_linear.1} parent=1 // loop_footer_branch
      %11 = sbr.rel target = $region3
    $region8: #{column_linear.1} parent=1 // loop_exit
      _
    %486 = vsyncpa [#allocation4], 1
    %s487 = scalar_lea.sflag [#allocation4], 1
    %488 = vsyncpa %s487, 1

</llo_original>
